<compile_context>
chip_gen: v7x
topology: tpu7x:2x2x1
jax: 0.10.0
libtpu: 0.0.40
codegen_flags: <defaults>
</compile_context>

<pallas_src>
import functools
import math

import jax
import jax.numpy as jnp
from jax.experimental import pallas as pl
from jax.experimental.pallas import tpu as pltpu


def _round_up(x, m):
    return ((x + m - 1) // m) * m


def _classifier_kernel(z_ref, w1_ref, b1_ref, w2_ref, b2_ref, o_ref, *, matmul_dtype):
    # z_ref:  [TB, H]  stored dtype    w1_ref: [H, Hh] matmul_dtype
    # b1_ref: [1, Hh]  f32             w2_ref: [1, Hh] f32
    # b2_ref: [1, 1]   f32 (SMEM)      o_ref:  [TB, 1] f32
    # Cast z in-register right before the MXU feed (hides under the z DMA).
    z = z_ref[...].astype(matmul_dtype)
    h = jnp.dot(z, w1_ref[...], preferred_element_type=jnp.float32)
    h = jnp.maximum(h + b1_ref[...], 0.0)
    # TODO(synk): training-mode Dropout(p=0.5) would need pltpu.prng_seed /
    # pltpu.prng_random_bits masking; eval-mode dropout (CE_PA.predict) is identity.
    # Linear2 has out_features == 1: an MXU matmul with N=1 wastes >99% of the
    # systolic array, so use a VPU broadcast-multiply + cross-lane reduction.
    s = jnp.sum(h * w2_ref[...], axis=-1, keepdims=True) + b2_ref[0, 0]   # [TB,1] f32
    # sigmoid: exp and approx reciprocal both go to the EUP slot (free next to
    # the VPU bias/ReLU epilogue).
    o_ref[...] = pl.reciprocal(1.0 + jnp.exp(-s), approx=True)


def _vmem_capacity_bytes():
    # Generation-aware: v5e/v6e have 128 MiB VMEM, v7x has 64 MiB per TC.
    try:
        return int(pltpu.get_tpu_info().vmem_capacity_bytes)
    except Exception:
        return 64 << 20   # conservative (v7x) floor


def _tile_bytes(tb, H, Hh, z_itm, mm_itm, weight_bufs):
    return (2 * tb * H * z_itm              # double-buffered z tiles
            + 2 * tb * 4                    # double-buffered [TB,1] outputs
            + weight_bufs * H * Hh * mm_itm  # resident W1
            + weight_bufs * 2 * Hh * 4      # resident b1, w2 rows
            + 3 * tb * Hh * 4               # f32 intermediates (h, h*w2, ...)
            + (2 << 20))                    # slack


def _choose_tb(bp, cap_rows):
    """Largest multiple-of-8 divisor of bp that fits cap_rows; prefer >=2 tiles
    so v7x's two TensorCores can both be used on the 'parallel' axis."""
    m = bp // 8
    cands = [8 * d for d in range(1, m + 1) if m % d == 0]
    multi = [t for t in cands if t <= cap_rows and bp // t >= 2]
    if multi:
        return max(multi)
    fit = [t for t in cands if t <= cap_rows]
    return max(fit) if fit else 8


def binary_classifier_forward(z, w1, b1, w2, b2, *, block_b=1024,
                              matmul_dtype=jnp.bfloat16):
    """Fused BinaryClassifier head.  z: [B, H] -> scores: [B, 1] float32."""
    B, H = z.shape
    Hh = w1.shape[1]

    # Pad only to the 8-row sublane granule (no pad-to-tile full-array copy);
    # the batch tile below is chosen from divisors of the padded batch.
    Bp = _round_up(B, 8)
    if Bp != B:
        z = jnp.pad(z, ((0, Bp - B), (0, 0)))

    z_itm = jnp.dtype(z.dtype).itemsize
    mm_itm = jnp.dtype(matmul_dtype).itemsize

    # VMEM budget with ~25% headroom for compiler-internal scratch.
    budget = int(_vmem_capacity_bytes() * 0.75)
    cap_rows = max(8, _round_up(int(block_b), 8))
    while cap_rows > 8 and _tile_bytes(cap_rows, H, Hh, z_itm, mm_itm, 2) > budget:
        cap_rows //= 2
    TB = _choose_tb(Bp, cap_rows)
    n_tiles = Bp // TB

    # One-time weight casts (tiny vs the z stream).  z itself is NOT cast here.
    # NOTE(v7x): matmul_dtype may be an fp8 type there (MXU-native); v5e/v6e: bf16.
    # NOTE: Hh is deliberately NOT padded to the MXU width -- on v6e/v7x the
    # kernel is HBM-bound on z, so MXU underfill is hidden; padding would only
    # add FLOPs and weight bytes.
    # TODO(synk): for encoder-scale H where W1 no longer fits resident on v7x,
    # add a K ('arbitrary') grid axis over H with an f32 VMEM accumulator
    # instead of shrinking the batch tile.
    w1_c = w1.astype(matmul_dtype)
    b1_r = b1.reshape(1, Hh).astype(jnp.float32)
    w2_r = w2.reshape(1, Hh).astype(jnp.float32)
    b2_r = b2.reshape(1, 1).astype(jnp.float32)

    vmem_limit = int(min(max(_tile_bytes(TB, H, Hh, z_itm, mm_itm, 2) + (4 << 20),
                             16 << 20),
                         _vmem_capacity_bytes()))

    cost = pl.CostEstimate(
        flops=2 * Bp * H * Hh + 3 * Bp * Hh,
        transcendentals=2 * Bp,   # exp + approx reciprocal per row
        bytes_accessed=Bp * H * z_itm + H * Hh * mm_itm + Bp * 4 + 2 * Hh * 4,
    )

    kernel = functools.partial(_classifier_kernel, matmul_dtype=matmul_dtype)

    def run(single_buffer_weights):
        # Constant-index resident inputs never need the default second pipeline
        # buffer; Buffered(1) halves their VMEM footprint.
        if single_buffer_weights and hasattr(pl, "Buffered"):
            res_kw = dict(pipeline_mode=pl.Buffered(1))
        else:
            res_kw = {}
        return pl.pallas_call(
            kernel,
            out_shape=jax.ShapeDtypeStruct((Bp, 1), jnp.float32),
            grid=(n_tiles,),
            in_specs=[
                pl.BlockSpec((TB, H), lambda i: (i, 0)),              # z: batch-tiled
                pl.BlockSpec((H, Hh), lambda i: (0, 0), **res_kw),    # W1: resident
                pl.BlockSpec((1, Hh), lambda i: (0, 0), **res_kw),    # b1: resident
                pl.BlockSpec((1, Hh), lambda i: (0, 0), **res_kw),    # w2 row: resident
                pl.BlockSpec(memory_space=pltpu.MemorySpace.SMEM),    # b2 scalar
            ],
            # [TB, 1] output: natural layout of the cross-lane reduction; the
            # masked store is only TB*4 bytes/tile, cheaper than relaying out
            # sublane->lane to make a lane-dense [1, TB] row.
            out_specs=pl.BlockSpec((TB, 1), lambda i: (i, 0)),
            compiler_params=pltpu.CompilerParams(
                dimension_semantics=("parallel",),
                vmem_limit_bytes=vmem_limit,
            ),
            cost_estimate=cost,
        )(z, w1_c, b1_r, w2_r, b2_r)

    try:
        out = run(True)
    except Exception:
        # pipeline_mode / pl.Buffered(1) not supported on this jax version:
        # fall back to default double-buffered weight specs.
        out = run(False)

    return out[:B]


def init_classifier_params(key, feat_dim):
    """Deterministic init matching nn.Linear shapes (uniform +-1/sqrt(fan_in))."""
    hidden = feat_dim // 2
    k1, k2, k3, k4 = jax.random.split(key, 4)
    lim1 = 1.0 / math.sqrt(feat_dim)
    lim2 = 1.0 / math.sqrt(hidden)
    w1 = jax.random.uniform(k1, (feat_dim, hidden), jnp.float32, -lim1, lim1)
    b1 = jax.random.uniform(k2, (1, hidden), jnp.float32, -lim1, lim1)
    w2 = jax.random.uniform(k3, (hidden, 1), jnp.float32, -lim2, lim2)
    b2 = jax.random.uniform(k4, (1, 1), jnp.float32, -lim2, lim2)
    return w1, b1, w2, b2


def ce_pa_forward(z_pooled, params, *, matmul_dtype=jnp.bfloat16):
    """CE_PA.forward with the encoder's pooled [CLS] embedding already given."""
    w1, b1, w2, b2 = params
    return binary_classifier_forward(z_pooled, w1, b1, w2, b2,
                                     matmul_dtype=matmul_dtype)


if __name__ == "__main__":
    key = jax.random.PRNGKey(0)
    k_z, k_p = jax.random.split(key)

    B = 8            # batch of (support, query) pairs
    HIDDEN = 32      # stand-in for pair_encoder.hidden_size (e.g. 768 for BERT)

    # z: pooled last_hidden_state[:, 0, :] from the (untranslatable) HF encoder.
    z = jax.random.normal(k_z, (B, HIDDEN), dtype=jnp.float32)
    params = init_classifier_params(k_p, HIDDEN)
    w1, b1, w2, b2 = params

    # Pure-f32 reference == original PyTorch BinaryClassifier (eval) semantics.
    h_ref = jnp.maximum(jnp.dot(z, w1) + b1, 0.0)
    y_ref = jax.nn.sigmoid(jnp.dot(h_ref, w2) + b2)

    # Validated-fidelity path: f32 MXU feed.
    y_f32 = jax.block_until_ready(
        binary_classifier_forward(z, w1, b1, w2, b2, matmul_dtype=jnp.float32))
    assert y_f32.shape == (B, 1)
    assert jnp.allclose(y_f32, y_ref, atol=2e-3, rtol=2e-3), "f32 path mismatch"

    # Perf path: bf16 MXU feed (cast in-kernel), f32 accumulation / epilogue.
    y_bf16 = jax.block_until_ready(ce_pa_forward(z, params))
    assert y_bf16.shape == (B, 1)
    assert jnp.allclose(y_bf16, y_ref, atol=5e-2, rtol=5e-2), "bf16 path mismatch"

    print("KERNEL_OK")
</pallas_src>

<mosaic_0001>
module attributes {stable_mosaic.version = 11 : i64} {
  func.func @_classifier_kernel(%arg0: i32, %arg1: memref<8x32xf32, #tpu.memory_space<vmem>>, %arg2: memref<32x16xf32, #tpu.memory_space<vmem>>, %arg3: memref<1x16xf32, #tpu.memory_space<vmem>>, %arg4: memref<1x16xf32, #tpu.memory_space<vmem>>, %arg5: memref<1x1xf32, #tpu.memory_space<smem>>, %arg6: memref<8x1xf32, #tpu.memory_space<vmem>>) attributes {dimension_semantics = [#tpu.dimension_semantics<parallel>], iteration_bounds = array<i64: 1>, scalar_prefetch = 0 : i64, scratch_operands = 0 : i64, tpu.core_type = #tpu.core_type<tc>, window_params = [{transform_indices = @transform_0, window_bounds = array<i64: 8, 32>}, {pipeline_mode = #tpu.pipeline_mode<synchronous>, transform_indices = @transform_1, window_bounds = array<i64: 32, 16>}, {pipeline_mode = #tpu.pipeline_mode<synchronous>, transform_indices = @transform_2, window_bounds = array<i64: 1, 16>}, {pipeline_mode = #tpu.pipeline_mode<synchronous>, transform_indices = @transform_3, window_bounds = array<i64: 1, 16>}, {transform_indices = @transform_4, window_bounds = array<i64: 1, 1>}, {transform_indices = @transform_5, window_bounds = array<i64: 8, 1>}]} {
    %c0 = arith.constant 0 : index
    %c0_0 = arith.constant 0 : index
    %0 = vector.load %arg1[%c0, %c0_0] : memref<8x32xf32, #tpu.memory_space<vmem>>, vector<8x32xf32>
    %c0_1 = arith.constant 0 : index
    %c0_2 = arith.constant 0 : index
    %1 = vector.load %arg2[%c0_1, %c0_2] : memref<32x16xf32, #tpu.memory_space<vmem>>, vector<32x16xf32>
    %cst = arith.constant dense<0.000000e+00> : vector<8x16xf32>
    %2 = tpu.matmul %0, %1, %cst {dimension_numbers = #tpu.dot_dimension_numbers<[1], [0], [0], [1], [0, 0, 1, 1], [], []>} : vector<8x32xf32>, vector<32x16xf32>, vector<8x16xf32> -> vector<8x16xf32>
    %c0_3 = arith.constant 0 : index
    %c0_4 = arith.constant 0 : index
    %3 = vector.load %arg3[%c0_3, %c0_4] : memref<1x16xf32, #tpu.memory_space<vmem>>, vector<1x16xf32>
    %4 = vector.broadcast %3 : vector<1x16xf32> to vector<8x16xf32>
    %5 = arith.addf %2, %4 : vector<8x16xf32>
    %cst_5 = arith.constant 0.000000e+00 : f32
    %6 = vector.broadcast %cst_5 : f32 to vector<8x16xf32>
    %7 = arith.maximumf %5, %6 : vector<8x16xf32>
    %c0_6 = arith.constant 0 : index
    %c0_7 = arith.constant 0 : index
    %8 = vector.load %arg4[%c0_6, %c0_7] : memref<1x16xf32, #tpu.memory_space<vmem>>, vector<1x16xf32>
    %9 = vector.broadcast %8 : vector<1x16xf32> to vector<8x16xf32>
    %10 = arith.mulf %7, %9 : vector<8x16xf32>
    %cst_8 = arith.constant dense<0.000000e+00> : vector<8xf32>
    %11 = vector.multi_reduction <add>, %10, %cst_8 [1] : vector<8x16xf32> to vector<8xf32>
    %12 = vector.shape_cast %11 : vector<8xf32> to vector<8x1xf32>
    %c0_9 = arith.constant 0 : index
    %c0_10 = arith.constant 0 : index
    %13 = memref.load %arg5[%c0_9, %c0_10] : memref<1x1xf32, #tpu.memory_space<smem>>
    %14 = vector.broadcast %13 : f32 to vector<8x1xf32>
    %15 = arith.addf %12, %14 : vector<8x1xf32>
    %cst_11 = arith.constant 0.000000e+00 : f32
    %16 = vector.broadcast %cst_11 : f32 to vector<8x1xf32>
    %17 = arith.subf %16, %15 : vector<8x1xf32>
    %18 = math.exp %17 : vector<8x1xf32>
    %cst_12 = arith.constant 1.000000e+00 : f32
    %19 = vector.broadcast %cst_12 : f32 to vector<8x1xf32>
    %20 = arith.addf %19, %18 : vector<8x1xf32>
    %21 = tpu.reciprocal %20 {approx = true} : vector<8x1xf32> -> vector<8x1xf32>
    %c0_13 = arith.constant 0 : index
    %c0_14 = arith.constant 0 : index
    %22 = vector.load %arg6[%c0_13, %c0_14] : memref<8x1xf32, #tpu.memory_space<vmem>>, vector<8x1xf32>
    tpu.vector_store %arg6[%c0_13, %c0_14], %21 {strides = array<i32>} : memref<8x1xf32, #tpu.memory_space<vmem>>, vector<8x1xf32>,
    return
  }
  func.func @transform_0(%arg0: i32) -> (i32, i32) {
    %c0_i32 = arith.constant 0 : i32
    %c0_i32_0 = arith.constant 0 : i32
    return %arg0, %c0_i32 : i32, i32
  }
  func.func @transform_1(%arg0: i32) -> (i32, i32) {
    %c0_i32 = arith.constant 0 : i32
    %c0_i32_0 = arith.constant 0 : i32
    %c0_i32_1 = arith.constant 0 : i32
    return %c0_i32, %c0_i32_0 : i32, i32
  }
  func.func @transform_2(%arg0: i32) -> (i32, i32) {
    %c0_i32 = arith.constant 0 : i32
    %c0_i32_0 = arith.constant 0 : i32
    %c0_i32_1 = arith.constant 0 : i32
    return %c0_i32, %c0_i32_0 : i32, i32
  }
  func.func @transform_3(%arg0: i32) -> (i32, i32) {
    %c0_i32 = arith.constant 0 : i32
    %c0_i32_0 = arith.constant 0 : i32
    %c0_i32_1 = arith.constant 0 : i32
    return %c0_i32, %c0_i32_0 : i32, i32
  }
  func.func @transform_4(%arg0: i32) -> (i32, i32) {
    %c0_i32 = arith.constant 0 : i32
    %c0_i32_0 = arith.constant 0 : i32
    %c0_i32_1 = arith.constant 0 : i32
    return %c0_i32, %c0_i32_0 : i32, i32
  }
  func.func @transform_5(%arg0: i32) -> (i32, i32) {
    %c0_i32 = arith.constant 0 : i32
    %c0_i32_0 = arith.constant 0 : i32
    return %arg0, %c0_i32 : i32, i32
  }
}

module attributes {stable_mosaic.version = 11 : i64} {
  func.func @_classifier_kernel(%arg0: i32, %arg1: memref<8x32xf32, #tpu.memory_space<vmem>>, %arg2: memref<32x16xf32, #tpu.memory_space<vmem>>, %arg3: memref<1x16xf32, #tpu.memory_space<vmem>>, %arg4: memref<1x16xf32, #tpu.memory_space<vmem>>, %arg5: memref<1x1xf32, #tpu.memory_space<smem>>, %arg6: memref<8x1xf32, #tpu.memory_space<vmem>>) attributes {dimension_semantics = [#tpu.dimension_semantics<parallel>], iteration_bounds = array<i64: 1>, scalar_prefetch = 0 : i64, scratch_operands = 0 : i64, tpu.core_type = #tpu.core_type<tc>, window_params = [{transform_indices = @transform_0, window_bounds = array<i64: 8, 32>}, {pipeline_mode = #tpu.pipeline_mode<synchronous>, transform_indices = @transform_1, window_bounds = array<i64: 32, 16>}, {pipeline_mode = #tpu.pipeline_mode<synchronous>, transform_indices = @transform_2, window_bounds = array<i64: 1, 16>}, {pipeline_mode = #tpu.pipeline_mode<synchronous>, transform_indices = @transform_3, window_bounds = array<i64: 1, 16>}, {transform_indices = @transform_4, window_bounds = array<i64: 1, 1>}, {transform_indices = @transform_5, window_bounds = array<i64: 8, 1>}]} {
    %c0 = arith.constant 0 : index
    %c0_0 = arith.constant 0 : index
    %0 = vector.load %arg1[%c0, %c0_0] : memref<8x32xf32, #tpu.memory_space<vmem>>, vector<8x32xf32>
    %c0_1 = arith.constant 0 : index
    %c0_2 = arith.constant 0 : index
    %1 = vector.load %arg2[%c0_1, %c0_2] : memref<32x16xf32, #tpu.memory_space<vmem>>, vector<32x16xf32>
    %cst = arith.constant dense<0.000000e+00> : vector<8x16xf32>
    %2 = tpu.matmul %0, %1, %cst {dimension_numbers = #tpu.dot_dimension_numbers<[1], [0], [0], [1], [0, 0, 1, 1], [], []>} : vector<8x32xf32>, vector<32x16xf32>, vector<8x16xf32> -> vector<8x16xf32>
    %c0_3 = arith.constant 0 : index
    %c0_4 = arith.constant 0 : index
    %3 = vector.load %arg3[%c0_3, %c0_4] : memref<1x16xf32, #tpu.memory_space<vmem>>, vector<1x16xf32>
    %4 = vector.broadcast %3 : vector<1x16xf32> to vector<8x16xf32>
    %5 = arith.addf %2, %4 : vector<8x16xf32>
    %cst_5 = arith.constant 0.000000e+00 : f32
    %6 = vector.broadcast %cst_5 : f32 to vector<8x16xf32>
    %7 = arith.maximumf %5, %6 : vector<8x16xf32>
    %c0_6 = arith.constant 0 : index
    %c0_7 = arith.constant 0 : index
    %8 = vector.load %arg4[%c0_6, %c0_7] : memref<1x16xf32, #tpu.memory_space<vmem>>, vector<1x16xf32>
    %9 = vector.broadcast %8 : vector<1x16xf32> to vector<8x16xf32>
    %10 = arith.mulf %7, %9 : vector<8x16xf32>
    %cst_8 = arith.constant dense<0.000000e+00> : vector<8xf32>
    %11 = vector.multi_reduction <add>, %10, %cst_8 [1] : vector<8x16xf32> to vector<8xf32>
    %12 = vector.shape_cast %11 : vector<8xf32> to vector<8x1xf32>
    %c0_9 = arith.constant 0 : index
    %c0_10 = arith.constant 0 : index
    %13 = memref.load %arg5[%c0_9, %c0_10] : memref<1x1xf32, #tpu.memory_space<smem>>
    %14 = vector.broadcast %13 : f32 to vector<8x1xf32>
    %15 = arith.addf %12, %14 : vector<8x1xf32>
    %cst_11 = arith.constant 0.000000e+00 : f32
    %16 = vector.broadcast %cst_11 : f32 to vector<8x1xf32>
    %17 = arith.subf %16, %15 : vector<8x1xf32>
    %18 = math.exp %17 : vector<8x1xf32>
    %cst_12 = arith.constant 1.000000e+00 : f32
    %19 = vector.broadcast %cst_12 : f32 to vector<8x1xf32>
    %20 = arith.addf %19, %18 : vector<8x1xf32>
    %21 = tpu.reciprocal %20 {approx = true} : vector<8x1xf32> -> vector<8x1xf32>
    %c0_13 = arith.constant 0 : index
    %c0_14 = arith.constant 0 : index
    %22 = vector.load %arg6[%c0_13, %c0_14] : memref<8x1xf32, #tpu.memory_space<vmem>>, vector<8x1xf32>
    tpu.vector_store %arg6[%c0_13, %c0_14], %21 {strides = array<i32>} : memref<8x1xf32, #tpu.memory_space<vmem>>, vector<8x1xf32>,
    return
  }
  func.func @transform_0(%arg0: i32) -> (i32, i32) {
    %c0_i32 = arith.constant 0 : i32
    %c0_i32_0 = arith.constant 0 : i32
    return %arg0, %c0_i32 : i32, i32
  }
  func.func @transform_1(%arg0: i32) -> (i32, i32) {
    %c0_i32 = arith.constant 0 : i32
    %c0_i32_0 = arith.constant 0 : i32
    %c0_i32_1 = arith.constant 0 : i32
    return %c0_i32, %c0_i32_0 : i32, i32
  }
  func.func @transform_2(%arg0: i32) -> (i32, i32) {
    %c0_i32 = arith.constant 0 : i32
    %c0_i32_0 = arith.constant 0 : i32
    %c0_i32_1 = arith.constant 0 : i32
    return %c0_i32, %c0_i32_0 : i32, i32
  }
  func.func @transform_3(%arg0: i32) -> (i32, i32) {
    %c0_i32 = arith.constant 0 : i32
    %c0_i32_0 = arith.constant 0 : i32
    %c0_i32_1 = arith.constant 0 : i32
    return %c0_i32, %c0_i32_0 : i32, i32
  }
  func.func @transform_4(%arg0: i32) -> (i32, i32) {
    %c0_i32 = arith.constant 0 : i32
    %c0_i32_0 = arith.constant 0 : i32
    %c0_i32_1 = arith.constant 0 : i32
    return %c0_i32, %c0_i32_0 : i32, i32
  }
  func.func @transform_5(%arg0: i32) -> (i32, i32) {
    %c0_i32 = arith.constant 0 : i32
    %c0_i32_0 = arith.constant 0 : i32
    return %arg0, %c0_i32 : i32, i32
  }
}

</mosaic_0001>

<llo_original>
// kernel: tpu_custom_call.1
$region0: #{tpu_custom_call.1}
  #allocation0 [shape = 'u32[]', space=smem, size = 0x4, offset = 0x4, fixed_abs, tag = 'smem constant byte address 0x4 - core index']
  #allocation1 [shape = 'u32[144,128]{1,0:T(1,128)}', space=vmem, size = 0x12000, scoped, tag = 'internal scratch']
  #allocation2 [shape = 'f32[1,1]{1,0:T(1,128)S(6)}', space=smem, size = 0x200, scoped, tag = 'scoped memory for tpu_custom_call.1']
  %s0 = inlined_call_operand.vmem [shape: f32[8,32], index: 0, kind: input, shape index: {}]
  %s1 = inlined_call_operand.vmem [shape: f32[32,16], index: 1, kind: input, shape index: {}]
  %s2 = inlined_call_operand.vmem [shape: f32[1,16], index: 2, kind: input, shape index: {}]
  %s3 = inlined_call_operand.vmem [shape: f32[1,16], index: 3, kind: input, shape index: {}]
  %s4 = inlined_call_operand.<no memory space> [shape: f32[1,1], index: 4, kind: input, shape index: {}]
  %s5 = inlined_call_operand.vmem [shape: f32[8,1], index: 5, kind: output, shape index: {}]
  %s6 = sld [smem:[#allocation0]]
  $region30: #{tpu_custom_call.1} parent=0
    _
  %s8 = ssub.s32 1, %s6
  %s9 = scalar_select 0, %s8, %s6
  %10 = sst [smem:[#allocation2]] %s4
  // Predicated region
  $region2: #{tpu_custom_call.1} parent=0 // pred_check
    _
  $region3: #{tpu_custom_call.1} parent=0 // pred_check_branch
    %12 = sbr.rel (0) target = $region5
  $region4: #{tpu_custom_call.1} parent=0 // pred_region
    _
  $region5: #{tpu_custom_call.1} parent=0 // pred_fallthru
    _
  // Predicated region
  $region6: #{tpu_custom_call.1} parent=0 // pred_check
    _
  $region7: #{tpu_custom_call.1} parent=0 // pred_check_branch
    %14 = sbr.rel (0) target = $region9
  $region8: #{tpu_custom_call.1} parent=0 // pred_region
    _
  $region9: #{tpu_custom_call.1} parent=0 // pred_fallthru
    _
  // Predicated region
  $region10: #{tpu_custom_call.1} parent=0 // pred_check
    _
  $region11: #{tpu_custom_call.1} parent=0 // pred_check_branch
    %16 = sbr.rel (0) target = $region13
  $region12: #{tpu_custom_call.1} parent=0 // pred_region
    _
  $region13: #{tpu_custom_call.1} parent=0 // pred_fallthru
    _
  // Predicated region
  $region14: #{tpu_custom_call.1} parent=0 // pred_check
    _
  $region15: #{tpu_custom_call.1} parent=0 // pred_check_branch
    %18 = sbr.rel (0) target = $region17
  $region16: #{tpu_custom_call.1} parent=0 // pred_region
    _
  $region17: #{tpu_custom_call.1} parent=0 // pred_fallthru
    _
  // Predicated region
  $region18: #{tpu_custom_call.1} parent=0 // pred_check
    _
  $region19: #{tpu_custom_call.1} parent=0 // pred_check_branch
    %20 = sbr.rel (0) target = $region21
  $region20: #{tpu_custom_call.1} parent=0 // pred_region
    _
  $region21: #{tpu_custom_call.1} parent=0 // pred_fallthru
    _
  %v21 = vld [vmem:[%s0] sm:$0xff]
  %v22 = vld [vmem:[%s1] sm:$0xff]
  %v23 = vld [vmem:[%s1 + $0x8] sm:$0xff]
  %v24 = vld [vmem:[%s1 + $0x10] sm:$0xff]
  %v25 = vld [vmem:[%s1 + $0x18] sm:$0xff]
  %v26 = vld [vmem:[%s2] sm:$0x1]
  %v28 = vlaneseq
  %v29 = vshrl.u32 %v28, 7
  %v30 = vsub.s32 0, %v29
  %v31 = vrot.slane %v26, %v30
  %vm33 = vcmask 261120
  %v35 = vsel %vm33, %v21, 0
  %37 = vmatprep.subr.mxu0 0.0
  %38 = vmatpush1.msra.mxu0 %v22
  %39 = vmatprep.subr.mxu0 0.0
  %40 = vmatpush1.msra.mxu0 %v23
  %41 = vmatprep.subr.mxu0 0.0
  %42 = vmatpush1.msra.mxu0 %v24
  %43 = vmatprep.subr.mxu0 0.0
  %44 = vmatpush1.msra.mxu0 %v25
  %45 = vmatprep.subr.mxu0 0.0
  %46 = vmatpush1.msra.mxu0 0.0
  %47 = vmatprep.subr.mxu0 0.0
  %48 = vmatpush1.msra.mxu0 0.0
  %49 = vmatprep.subr.mxu0 0.0
  %50 = vmatpush1.msra.mxu0 0.0
  %51 = vmatprep.subr.mxu0 0.0
  %52 = vmatpush1.msra.mxu0 0.0
  %53 = vmatprep.subr.mxu0 0.0
  %54 = vmatpush1.msra.mxu0 0.0
  %55 = vmatprep.subr.mxu0 0.0
  %56 = vmatpush1.msra.mxu0 0.0
  %57 = vmatprep.subr.mxu0 0.0
  %58 = vmatpush1.msra.mxu0 0.0
  %59 = vmatprep.subr.mxu0 0.0
  %60 = vmatpush1.msra.mxu0 0.0
  %61 = vmatprep.subr.mxu0 0.0
  %62 = vmatpush1.msra.mxu0 0.0
  %63 = vmatprep.subr.mxu0 0.0
  %64 = vmatpush1.msra.mxu0 0.0
  %65 = vmatprep.subr.mxu0 0.0
  %66 = vmatpush1.msra.mxu0 0.0
  %67 = vmatprep.subr.mxu0 0.0
  %68 = vmatpush1.msra.mxu0 0.0
  %69 = vmatprep.subr.mxu0 0.0
  %70 = vmatpush1.msra.mxu0 0.0
  %71 = vmatprep.subr.mxu0 0.0
  %72 = vmatpush1.msra.mxu0 0.0
  %73 = vmatprep.subr.mxu0 0.0
  %74 = vmatpush1.msra.mxu0 0.0
  %75 = vmatprep.subr.mxu0 0.0
  %76 = vmatpush1.msra.mxu0 0.0
  %77 = vmatprep.subr.mxu0 0.0
  %78 = vmatpush1.msra.mxu0 0.0
  %79 = vmatprep.subr.mxu0 0.0
  %80 = vmatpush1.msra.mxu0 0.0
  %81 = vmatprep.subr.mxu0 0.0
  %82 = vmatpush1.msra.mxu0 0.0
  %83 = vmatprep.subr.mxu0 0.0
  %84 = vmatpush1.msra.mxu0 0.0
  %85 = vmatprep.subr.mxu0 0.0
  %86 = vmatpush1.msra.mxu0 0.0
  %87 = vmatprep.subr.mxu0 0.0
  %88 = vmatpush1.msra.mxu0 0.0
  %89 = vmatprep.subr.mxu0 0.0
  %90 = vmatpush1.msra.mxu0 0.0
  %91 = vmatprep.subr.mxu0 0.0
  %92 = vmatpush1.msra.mxu0 0.0
  %93 = vmatprep.subr.mxu0 0.0
  %94 = vmatpush1.msra.mxu0 0.0
  %95 = vmatprep.subr.mxu0 0.0
  %96 = vmatpush1.msra.mxu0 0.0
  %97 = vmatprep.subr.mxu0 0.0
  %98 = vmatpush1.msra.mxu0 0.0
  %99 = vmatprep.subr.mxu0 0.0
  %100 = vmatpush1.msra.mxu0 0.0
  %101 = vmatprep.mubr.f32.mxu0 0.0
  %102 = vmatmul.mubr.f32.gmra.mrb[0].mxu0 %v35
  %v103 = vpop.f32.mrb[0].mxu0
  %v104 = vadd.f32 %v31, %v103
  %v105 = vpop.f32.mrb[0].mxu0
  %106 = vdwg.mxu0
  %v107 = vmax.f32 %v104, 0.0
  %v108 = vld [vmem:[%s3] sm:$0x1]
  %v110 = vlaneseq
  %v111 = vshrl.u32 %v110, 7
  %v112 = vsub.s32 0, %v111
  %v113 = vrot.slane %v108, %v112
  %v115 = vmul.f32 %v107, %v113
  %vm116 = vcmask 130048
  %v117 = vsel %vm116, %v115, 0.0
  %118 = vadd.xlane.f32.xlu0 %v117
  %v119 = vpop.xlane.xlu0 %118
  %s120 = sld [smem:[#allocation2]]
  %v121 = vstv %s120
  %v122 = vadd.f32 %v119, %v121
  %v123 = vsub.f32 0.0, %v122
  %v124 = vmul.f32 %v123, 1.442695
  %v125 = vpow.pop %v124
  %v126 = vadd.f32 %v125, 1.0
  %v127 = vrcp.pop %v126
  %vm128 = vcmask 7168
  %129 = vst.msk [vmem:[%s5] sm:$0xff] %vm128, %v127
  // Predicated region
  $region22: #{tpu_custom_call.1} parent=0 // pred_check
    _
  $region23: #{tpu_custom_call.1} parent=0 // pred_check_branch
    %131 = sbr.rel (0) target = $region25
  $region24: #{tpu_custom_call.1} parent=0 // pred_region
    _
  $region25: #{tpu_custom_call.1} parent=0 // pred_fallthru
    _
  // Predicated region
  $region26: #{tpu_custom_call.1} parent=0 // pred_check
    _
  $region27: #{tpu_custom_call.1} parent=0 // pred_check_branch
    %133 = sbr.rel (0) target = $region29
  $region28: #{tpu_custom_call.1} parent=0 // pred_region
    _
  $region29: #{tpu_custom_call.1} parent=0 // pred_fallthru
    _

// kernel: tpu_custom_call.1
$region0: #{tpu_custom_call.1}
  #allocation0 [shape = 'u32[]', space=smem, size = 0x4, offset = 0x4, fixed_abs, tag = 'smem constant byte address 0x4 - core index']
  #allocation1 [shape = 'u32[144,128]{1,0:T(1,128)}', space=vmem, size = 0x12000, scoped, tag = 'internal scratch']
  #allocation2 [shape = 'f32[1,1]{1,0:T(1,128)S(6)}', space=smem, size = 0x200, scoped, tag = 'scoped memory for tpu_custom_call.1']
  %s0 = inlined_call_operand.vmem [shape: f32[8,32], index: 0, kind: input, shape index: {}]
  %s1 = inlined_call_operand.vmem [shape: f32[32,16], index: 1, kind: input, shape index: {}]
  %s2 = inlined_call_operand.vmem [shape: f32[1,16], index: 2, kind: input, shape index: {}]
  %s3 = inlined_call_operand.vmem [shape: f32[1,16], index: 3, kind: input, shape index: {}]
  %s4 = inlined_call_operand.<no memory space> [shape: f32[1,1], index: 4, kind: input, shape index: {}]
  %s5 = inlined_call_operand.vmem [shape: f32[8,1], index: 5, kind: output, shape index: {}]
  %s6 = sld [smem:[#allocation0]]
  $region30: #{tpu_custom_call.1} parent=0
    _
  %s8 = ssub.s32 1, %s6
  %s9 = scalar_select 0, %s8, %s6
  %10 = sst [smem:[#allocation2]] %s4
  // Predicated region
  $region2: #{tpu_custom_call.1} parent=0 // pred_check
    _
  $region3: #{tpu_custom_call.1} parent=0 // pred_check_branch
    %12 = sbr.rel (0) target = $region5
  $region4: #{tpu_custom_call.1} parent=0 // pred_region
    _
  $region5: #{tpu_custom_call.1} parent=0 // pred_fallthru
    _
  // Predicated region
  $region6: #{tpu_custom_call.1} parent=0 // pred_check
    _
  $region7: #{tpu_custom_call.1} parent=0 // pred_check_branch
    %14 = sbr.rel (0) target = $region9
  $region8: #{tpu_custom_call.1} parent=0 // pred_region
    _
  $region9: #{tpu_custom_call.1} parent=0 // pred_fallthru
    _
  // Predicated region
  $region10: #{tpu_custom_call.1} parent=0 // pred_check
    _
  $region11: #{tpu_custom_call.1} parent=0 // pred_check_branch
    %16 = sbr.rel (0) target = $region13
  $region12: #{tpu_custom_call.1} parent=0 // pred_region
    _
  $region13: #{tpu_custom_call.1} parent=0 // pred_fallthru
    _
  // Predicated region
  $region14: #{tpu_custom_call.1} parent=0 // pred_check
    _
  $region15: #{tpu_custom_call.1} parent=0 // pred_check_branch
    %18 = sbr.rel (0) target = $region17
  $region16: #{tpu_custom_call.1} parent=0 // pred_region
    _
  $region17: #{tpu_custom_call.1} parent=0 // pred_fallthru
    _
  // Predicated region
  $region18: #{tpu_custom_call.1} parent=0 // pred_check
    _
  $region19: #{tpu_custom_call.1} parent=0 // pred_check_branch
    %20 = sbr.rel (0) target = $region21
  $region20: #{tpu_custom_call.1} parent=0 // pred_region
    _
  $region21: #{tpu_custom_call.1} parent=0 // pred_fallthru
    _
  %v21 = vld [vmem:[%s0] sm:$0xff]
  %v22 = vld [vmem:[%s1] sm:$0xff]
  %v23 = vld [vmem:[%s1 + $0x8] sm:$0xff]
  %v24 = vld [vmem:[%s1 + $0x10] sm:$0xff]
  %v25 = vld [vmem:[%s1 + $0x18] sm:$0xff]
  %v26 = vld [vmem:[%s2] sm:$0x1]
  %v28 = vlaneseq
  %v29 = vshrl.u32 %v28, 7
  %v30 = vsub.s32 0, %v29
  %v31 = vrot.slane %v26, %v30
  %vm33 = vcmask 261120
  %v35 = vsel %vm33, %v21, 0
  %37 = vmatprep.subr.mxu0 0.0
  %38 = vmatpush1.msra.mxu0 %v22
  %39 = vmatprep.subr.mxu0 0.0
  %40 = vmatpush1.msra.mxu0 %v23
  %41 = vmatprep.subr.mxu0 0.0
  %42 = vmatpush1.msra.mxu0 %v24
  %43 = vmatprep.subr.mxu0 0.0
  %44 = vmatpush1.msra.mxu0 %v25
  %45 = vmatprep.subr.mxu0 0.0
  %46 = vmatpush1.msra.mxu0 0.0
  %47 = vmatprep.subr.mxu0 0.0
  %48 = vmatpush1.msra.mxu0 0.0
  %49 = vmatprep.subr.mxu0 0.0
  %50 = vmatpush1.msra.mxu0 0.0
  %51 = vmatprep.subr.mxu0 0.0
  %52 = vmatpush1.msra.mxu0 0.0
  %53 = vmatprep.subr.mxu0 0.0
  %54 = vmatpush1.msra.mxu0 0.0
  %55 = vmatprep.subr.mxu0 0.0
  %56 = vmatpush1.msra.mxu0 0.0
  %57 = vmatprep.subr.mxu0 0.0
  %58 = vmatpush1.msra.mxu0 0.0
  %59 = vmatprep.subr.mxu0 0.0
  %60 = vmatpush1.msra.mxu0 0.0
  %61 = vmatprep.subr.mxu0 0.0
  %62 = vmatpush1.msra.mxu0 0.0
  %63 = vmatprep.subr.mxu0 0.0
  %64 = vmatpush1.msra.mxu0 0.0
  %65 = vmatprep.subr.mxu0 0.0
  %66 = vmatpush1.msra.mxu0 0.0
  %67 = vmatprep.subr.mxu0 0.0
  %68 = vmatpush1.msra.mxu0 0.0
  %69 = vmatprep.subr.mxu0 0.0
  %70 = vmatpush1.msra.mxu0 0.0
  %71 = vmatprep.subr.mxu0 0.0
  %72 = vmatpush1.msra.mxu0 0.0
  %73 = vmatprep.subr.mxu0 0.0
  %74 = vmatpush1.msra.mxu0 0.0
  %75 = vmatprep.subr.mxu0 0.0
  %76 = vmatpush1.msra.mxu0 0.0
  %77 = vmatprep.subr.mxu0 0.0
  %78 = vmatpush1.msra.mxu0 0.0
  %79 = vmatprep.subr.mxu0 0.0
  %80 = vmatpush1.msra.mxu0 0.0
  %81 = vmatprep.subr.mxu0 0.0
  %82 = vmatpush1.msra.mxu0 0.0
  %83 = vmatprep.subr.mxu0 0.0
  %84 = vmatpush1.msra.mxu0 0.0
  %85 = vmatprep.subr.mxu0 0.0
  %86 = vmatpush1.msra.mxu0 0.0
  %87 = vmatprep.subr.mxu0 0.0
  %88 = vmatpush1.msra.mxu0 0.0
  %89 = vmatprep.subr.mxu0 0.0
  %90 = vmatpush1.msra.mxu0 0.0
  %91 = vmatprep.subr.mxu0 0.0
  %92 = vmatpush1.msra.mxu0 0.0
  %93 = vmatprep.subr.mxu0 0.0
  %94 = vmatpush1.msra.mxu0 0.0
  %95 = vmatprep.subr.mxu0 0.0
  %96 = vmatpush1.msra.mxu0 0.0
  %97 = vmatprep.subr.mxu0 0.0
  %98 = vmatpush1.msra.mxu0 0.0
  %99 = vmatprep.subr.mxu0 0.0
  %100 = vmatpush1.msra.mxu0 0.0
  %101 = vmatprep.mubr.f32.mxu0 0.0
  %102 = vmatmul.mubr.f32.gmra.mrb[0].mxu0 %v35
  %v103 = vpop.f32.mrb[0].mxu0
  %v104 = vadd.f32 %v31, %v103
  %v105 = vpop.f32.mrb[0].mxu0
  %106 = vdwg.mxu0
  %v107 = vmax.f32 %v104, 0.0
  %v108 = vld [vmem:[%s3] sm:$0x1]
  %v110 = vlaneseq
  %v111 = vshrl.u32 %v110, 7
  %v112 = vsub.s32 0, %v111
  %v113 = vrot.slane %v108, %v112
  %v115 = vmul.f32 %v107, %v113
  %vm116 = vcmask 130048
  %v117 = vsel %vm116, %v115, 0.0
  %118 = vadd.xlane.f32.xlu0 %v117
  %v119 = vpop.xlane.xlu0 %118
  %s120 = sld [smem:[#allocation2]]
  %v121 = vstv %s120
  %v122 = vadd.f32 %v119, %v121
  %v123 = vsub.f32 0.0, %v122
  %v124 = vmul.f32 %v123, 1.442695
  %v125 = vpow.pop %v124
  %v126 = vadd.f32 %v125, 1.0
  %v127 = vrcp.pop %v126
  %vm128 = vcmask 7168
  %129 = vst.msk [vmem:[%s5] sm:$0xff] %vm128, %v127
  // Predicated region
  $region22: #{tpu_custom_call.1} parent=0 // pred_check
    _
  $region23: #{tpu_custom_call.1} parent=0 // pred_check_branch
    %131 = sbr.rel (0) target = $region25
  $region24: #{tpu_custom_call.1} parent=0 // pred_region
    _
  $region25: #{tpu_custom_call.1} parent=0 // pred_fallthru
    _
  // Predicated region
  $region26: #{tpu_custom_call.1} parent=0 // pred_check
    _
  $region27: #{tpu_custom_call.1} parent=0 // pred_check_branch
    %133 = sbr.rel (0) target = $region29
  $region28: #{tpu_custom_call.1} parent=0 // pred_region
    _
  $region29: #{tpu_custom_call.1} parent=0 // pred_fallthru
    _

</llo_original>
